<compile_context>
chip_gen: v5e
topology: v5e:2x2
jax: 0.10.0
libtpu: 0.0.40
codegen_flags: <defaults>
</compile_context>

<pallas_src>
import jax
import jax.numpy as jnp
from jax.experimental import pallas as pl
from jax.experimental.pallas import tpu as pltpu


def conv_block_kernel(x_ref, wb_ref, b_ref, o_ref):
    # x_ref : (Nb*H, W*Cin)   batch-folded input rows (lanes = W*Cin)
    # wb_ref: (W*Cin, KH*L)   KH banded weight groups, each padded to L=128 lanes
    # b_ref : (1, L)          bias tiled over Wo, zero-padded to L lanes
    # o_ref : (Nb*H, L)       lane-dense output slab (per-image rows >= Ho are don't-care)
    rows, L = o_ref.shape
    KH = wb_ref.shape[1] // L
    # Single MXU pass: M = Nb*H, K = W*Cin, N = KH*L.
    res = jnp.dot(x_ref[...], wb_ref[...], preferred_element_type=jnp.float32)
    # out[r] = sum_kh band_kh[r + kh]; bias-initialized accumulator.
    acc = b_ref[...] + res[:, :L]
    for kh in range(1, KH):
        band = res[:, kh * L:(kh + 1) * L]                      # vreg-aligned lane slice
        acc = acc + pltpu.roll(band, rows - kh, axis=0)         # == jnp.roll(band, -kh, 0)
    # ReLU in f32; with_bn=False -> norm is the identity.
    o_ref[...] = jnp.maximum(acc, 0.0).astype(o_ref.dtype)


def _banded_weights(w_hwio, W, lane):
    # WB[w*Cin+ci, kh*lane + j*Cout+co] = w[kh, w-j, ci, co] if 0 <= w-j < KW else 0.
    KH, KW, Cin, Cout = w_hwio.shape
    Wo = W - KW + 1
    mask = (jnp.arange(W)[None, :, None]
            == jnp.arange(Wo)[None, None, :] + jnp.arange(KW)[:, None, None]
            ).astype(w_hwio.dtype)                               # (KW, W, Wo)
    wb = jnp.einsum("awj,kaco->kwcjo", mask, w_hwio)             # (KH, W, Cin, Wo, Cout)
    wb = wb.reshape(KH, W * Cin, Wo * Cout)
    wb = jnp.pad(wb, ((0, 0), (0, 0), (0, lane - Wo * Cout)))    # pad bands to full lanes
    return jnp.transpose(wb, (1, 0, 2)).reshape(W * Cin, KH * lane)


def conv_block(x_nchw, w_oihw, bias, *, block_n=None, vmem_budget_bytes=8 << 20):
    """ConvBlock forward: Conv2d(kernel, stride=1, pad=0) -> bias -> ReLU -> identity norm.

    x_nchw: (N, Cin, H, W), w_oihw: (Cout, Cin, KH, KW), bias: (Cout,).
    Returns (N, Cout, Ho, Wo) in the PyTorch NCHW convention.
    """
    N, Cin, H, W = x_nchw.shape
    Cout, _, KH, KW = w_oihw.shape
    Ho, Wo = H - KH + 1, W - KW + 1
    lane = pl.cdiv(Wo * Cout, 128) * 128             # output columns padded to full lanes

    if block_n is None:
        per_img = 2 * (H * W * Cin + H * lane) * 4               # double-buffered in + out
        fixed = 2 * (W * Cin * KH * lane + lane) * 4             # weights + bias (invariant)
        cap = max(1, (vmem_budget_bytes - fixed) // per_img)
        block_n = int(min(N, cap))
        while N % block_n:                                       # exact divisor of N
            block_n -= 1
    if (block_n * H) % 8 and block_n != N:                       # keep sublane-tileable blocks
        block_n = N
    assert N % block_n == 0
    grid = (N // block_n,)

    # Layout plumbing done once in the wrapper (precompute wb/bias_t for inference reuse).
    x2d = jnp.transpose(x_nchw, (0, 2, 3, 1)).reshape(N * H, W * Cin)
    w_hwio = jnp.transpose(w_oihw, (2, 3, 1, 0))                 # OIHW -> HWIO
    wb = _banded_weights(w_hwio, W, lane)                        # (W*Cin, KH*lane)
    bias_t = jnp.pad(jnp.tile(bias, Wo), (0, lane - Wo * Cout)).reshape(1, lane)

    out2d = pl.pallas_call(
        conv_block_kernel,
        out_shape=jax.ShapeDtypeStruct((N * H, lane), x_nchw.dtype),
        grid_spec=pltpu.PrefetchScalarGridSpec(
            num_scalar_prefetch=0,
            grid=grid,
            in_specs=[
                pl.BlockSpec((block_n * H, W * Cin), lambda g: (g, 0)),
                pl.BlockSpec((W * Cin, KH * lane), lambda g: (0, 0)),
                pl.BlockSpec((1, lane), lambda g: (0, 0)),
            ],
            out_specs=pl.BlockSpec((block_n * H, lane), lambda g: (g, 0)),
        ),
        compiler_params=pltpu.CompilerParams(
            dimension_semantics=("parallel",)),
    )(x2d, wb, bias_t)

    # Drop per-image junk rows and pad lanes; return PyTorch NCHW layout.
    out = out2d.reshape(N, H, lane)[:, :Ho, :Wo * Cout].reshape(N, Ho, Wo, Cout)
    return jnp.transpose(out, (0, 3, 1, 2))


def xavier_uniform(key, shape_oihw):
    # nn.init.xavier_uniform on Conv2d weight (Cout, Cin, KH, KW)
    cout, cin, kh, kw = shape_oihw
    fan_in, fan_out = cin * kh * kw, cout * kh * kw
    limit = (6.0 / (fan_in + fan_out)) ** 0.5
    return jax.random.uniform(key, shape_oihw, jnp.float32, -limit, limit)


if __name__ == "__main__":
    key = jax.random.PRNGKey(0)
    kx, kw = jax.random.split(key)

    N, Cin, H, W = 2, 4, 16, 16
    Cout, K = 8, 3

    # Inputs follow the PyTorch NCHW / OIHW convention.
    x_nchw = jax.random.normal(kx, (N, Cin, H, W), jnp.float32)
    w_oihw = xavier_uniform(kw, (Cout, Cin, K, K))
    bias = jnp.full((Cout,), 0.2, jnp.float32)       # conv.bias.data.fill_(0.2)

    fwd = jax.jit(conv_block)
    out_nchw = jax.block_until_ready(fwd(x_nchw, w_oihw, bias))
    assert out_nchw.shape == (N, Cout, H - K + 1, W - K + 1)

    # Reference check: XLA conv (same NCHW/OIHW convention) + bias + ReLU.
    ref = jax.lax.conv_general_dilated(
        x_nchw, w_oihw, window_strides=(1, 1), padding="VALID",
        dimension_numbers=("NCHW", "OIHW", "NCHW"))
    ref = jnp.maximum(ref + bias[None, :, None, None], 0.0)
    assert jnp.allclose(out_nchw, ref, atol=1e-4, rtol=1e-4)

    # TODO(synk): with_bn=True (BatchNorm2d) and stride != 1 branches not implemented;
    # module defaults (with_bn=False, stride=1) are what this kernel computes.
    print("KERNEL_OK")
</pallas_src>

<mosaic_0001>
module attributes {stable_mosaic.version = 11 : i64} {
  func.func @conv_block_kernel(%arg0: i32, %arg1: memref<32x64xf32, #tpu.memory_space<vmem>>, %arg2: memref<64x384xf32, #tpu.memory_space<vmem>>, %arg3: memref<1x128xf32, #tpu.memory_space<vmem>>, %arg4: memref<32x128xf32, #tpu.memory_space<vmem>>) attributes {dimension_semantics = [#tpu.dimension_semantics<parallel>], iteration_bounds = array<i64: 1>, scalar_prefetch = 0 : i64, scratch_operands = 0 : i64, tpu.core_type = #tpu.core_type<tc>, window_params = [{transform_indices = @transform_0, window_bounds = array<i64: 32, 64>}, {pipeline_mode = #tpu.pipeline_mode<synchronous>, transform_indices = @transform_1, window_bounds = array<i64: 64, 384>}, {pipeline_mode = #tpu.pipeline_mode<synchronous>, transform_indices = @transform_2, window_bounds = array<i64: 1, 128>}, {transform_indices = @transform_3, window_bounds = array<i64: 32, 128>}]} {
    %c0 = arith.constant 0 : index
    %c0_0 = arith.constant 0 : index
    %0 = vector.load %arg1[%c0, %c0_0] : memref<32x64xf32, #tpu.memory_space<vmem>>, vector<32x64xf32>
    %c0_1 = arith.constant 0 : index
    %c0_2 = arith.constant 0 : index
    %1 = vector.load %arg2[%c0_1, %c0_2] : memref<64x384xf32, #tpu.memory_space<vmem>>, vector<64x384xf32>
    %cst = arith.constant dense<0.000000e+00> : vector<32x384xf32>
    %2 = tpu.matmul %0, %1, %cst {dimension_numbers = #tpu.dot_dimension_numbers<[1], [0], [0], [1], [0, 0, 1, 1], [], []>} : vector<32x64xf32>, vector<64x384xf32>, vector<32x384xf32> -> vector<32x384xf32>
    %c0_3 = arith.constant 0 : index
    %c0_4 = arith.constant 0 : index
    %3 = vector.load %arg3[%c0_3, %c0_4] : memref<1x128xf32, #tpu.memory_space<vmem>>, vector<1x128xf32>
    %4 = vector.extract_strided_slice %2 {offsets = [0, 0], sizes = [32, 128], strides = [1, 1]} : vector<32x384xf32> to vector<32x128xf32>
    %5 = vector.broadcast %3 : vector<1x128xf32> to vector<32x128xf32>
    %6 = arith.addf %5, %4 : vector<32x128xf32>
    %7 = vector.extract_strided_slice %2 {offsets = [0, 128], sizes = [32, 128], strides = [1, 1]} : vector<32x384xf32> to vector<32x128xf32>
    %c31_i32 = arith.constant 31 : i32
    %8 = tpu.dynamic_rotate %7 by %c31_i32 dim 0 : vector<32x128xf32>, i32 -> vector<32x128xf32>
    %9 = arith.addf %6, %8 : vector<32x128xf32>
    %10 = vector.extract_strided_slice %2 {offsets = [0, 256], sizes = [32, 128], strides = [1, 1]} : vector<32x384xf32> to vector<32x128xf32>
    %c30_i32 = arith.constant 30 : i32
    %11 = tpu.dynamic_rotate %10 by %c30_i32 dim 0 : vector<32x128xf32>, i32 -> vector<32x128xf32>
    %12 = arith.addf %9, %11 : vector<32x128xf32>
    %cst_5 = arith.constant 0.000000e+00 : f32
    %13 = vector.broadcast %cst_5 : f32 to vector<32x128xf32>
    %14 = arith.maximumf %12, %13 : vector<32x128xf32>
    %c0_6 = arith.constant 0 : index
    %c0_7 = arith.constant 0 : index
    %15 = vector.load %arg4[%c0_6, %c0_7] : memref<32x128xf32, #tpu.memory_space<vmem>>, vector<32x128xf32>
    tpu.vector_store %arg4[%c0_6, %c0_7], %14 {strides = array<i32>} : memref<32x128xf32, #tpu.memory_space<vmem>>, vector<32x128xf32>,
    return
  }
  func.func @transform_0(%arg0: i32) -> (i32, i32) {
    %c0_i32 = arith.constant 0 : i32
    %c0_i32_0 = arith.constant 0 : i32
    return %arg0, %c0_i32 : i32, i32
  }
  func.func @transform_1(%arg0: i32) -> (i32, i32) {
    %c0_i32 = arith.constant 0 : i32
    %c0_i32_0 = arith.constant 0 : i32
    %c0_i32_1 = arith.constant 0 : i32
    return %c0_i32, %c0_i32_0 : i32, i32
  }
  func.func @transform_2(%arg0: i32) -> (i32, i32) {
    %c0_i32 = arith.constant 0 : i32
    %c0_i32_0 = arith.constant 0 : i32
    %c0_i32_1 = arith.constant 0 : i32
    return %c0_i32, %c0_i32_0 : i32, i32
  }
  func.func @transform_3(%arg0: i32) -> (i32, i32) {
    %c0_i32 = arith.constant 0 : i32
    %c0_i32_0 = arith.constant 0 : i32
    return %arg0, %c0_i32 : i32, i32
  }
}

</mosaic_0001>

<llo_original>
// kernel: tile.8
$region0: #{tile.8}
  #allocation0 [shape = 's32[1]{0}', space=sflag, size = 0x4, scoped, tag = 'scoped memory for tile.8']
  %s0 = inlined_call_operand.vmem [shape: f32[8], index: 0, kind: input, shape index: {}]
  %s1 = inlined_call_operand.vmem [shape: f32[14,8], index: 1, kind: output, shape index: {}]
  // Predicated region
  $region2: #{tile.8} parent=0 // pred_check
    _
  $region3: #{tile.8} parent=0 // pred_check_branch
    %3 = sbr.rel (0) target = $region5
  $region4: #{tile.8} parent=0 // pred_region
    _
  $region5: #{tile.8} parent=0 // pred_fallthru
    _
  %v4 = vld [vmem:[%s0] ss:$0 sm:$0xff]
  %5 = vst [vmem:[%s1] sm:$0xff] %v4
  %s6 = scalar_lea.vmem %s1, 8
  %7 = vst [vmem:[%s6] sm:$0xff] %v4

// kernel: tile.9
$region0: #{tile.9}
  %s0 = inlined_call_operand.vmem [shape: f32[14,8], index: 0, kind: input, shape index: {}]
  %s1 = inlined_call_operand.vmem [shape: f32[112], index: 1, kind: output, shape index: {}]
  $region1: #{tile.9} parent=0
    #allocation0 [shape = 'u8[4096]{0}', space=vmem, size = 0x1000, scoped, tag = 'scoped mem for output reshape']
    %v2 = vld [vmem:[%s0] sm:$0x1]
    %vm3 = vcmask 64512
    %4 = vst.msk [vmem:[#allocation0] sm:$0x1] %vm3, %v2
    %s5 = scalar_lea.vmem %s0, 13
    %v6 = vld [vmem:[%s5] sm:$0x1]
    %7 = vrot.lane.b32.xlu0 %v6, 104
    %v8 = vpop.permute.xlu0 %7
    %vm9 = vcmask 917312
    %10 = vst.msk [vmem:[#allocation0] sm:$0x1] %vm9, %v8
    %s11 = scalar_lea.vmem %s0, 12
    %v12 = vld [vmem:[%s11] sm:$0x1]
    %13 = vrot.lane.b32.xlu0 %v12, 96
    %v14 = vpop.permute.xlu0 %13
    %vm15 = vcmask 851712
    %16 = vst.msk [vmem:[#allocation0] sm:$0x1] %vm15, %v14
    %s17 = scalar_lea.vmem %s0, 11
    %v18 = vld [vmem:[%s17] sm:$0x1]
    %19 = vrot.lane.b32.xlu0 %v18, 88
    %v20 = vpop.permute.xlu0 %19
    %vm21 = vcmask 786112
    %22 = vst.msk [vmem:[#allocation0] sm:$0x1] %vm21, %v20
    %s23 = scalar_lea.vmem %s0, 10
    %v24 = vld [vmem:[%s23] sm:$0x1]
    %25 = vrot.lane.b32.xlu0 %v24, 80
    %v26 = vpop.permute.xlu0 %25
    %vm27 = vcmask 720512
    %28 = vst.msk [vmem:[#allocation0] sm:$0x1] %vm27, %v26
    %s29 = scalar_lea.vmem %s0, 9
    %v30 = vld [vmem:[%s29] sm:$0x1]
    %31 = vrot.lane.b32.xlu0 %v30, 72
    %v32 = vpop.permute.xlu0 %31
    %vm33 = vcmask 654912
    %34 = vst.msk [vmem:[#allocation0] sm:$0x1] %vm33, %v32
    %s35 = scalar_lea.vmem %s0, 8
    %v36 = vld [vmem:[%s35] sm:$0x1]
    %37 = vrot.lane.b32.xlu0 %v36, 64
    %v38 = vpop.permute.xlu0 %37
    %vm39 = vcmask 589312
    %40 = vst.msk [vmem:[#allocation0] sm:$0x1] %vm39, %v38
    %s41 = scalar_lea.vmem %s0, 7
    %v42 = vld [vmem:[%s41] sm:$0x1]
    %43 = vrot.lane.b32.xlu0 %v42, 56
    %v44 = vpop.permute.xlu0 %43
    %vm45 = vcmask 523712
    %46 = vst.msk [vmem:[#allocation0] sm:$0x1] %vm45, %v44
    %s47 = scalar_lea.vmem %s0, 6
    %v48 = vld [vmem:[%s47] sm:$0x1]
    %49 = vrot.lane.b32.xlu0 %v48, 48
    %v50 = vpop.permute.xlu0 %49
    %vm51 = vcmask 458112
    %52 = vst.msk [vmem:[#allocation0] sm:$0x1] %vm51, %v50
    %s53 = scalar_lea.vmem %s0, 5
    %v54 = vld [vmem:[%s53] sm:$0x1]
    %55 = vrot.lane.b32.xlu0 %v54, 40
    %v56 = vpop.permute.xlu0 %55
    %vm57 = vcmask 392512
    %58 = vst.msk [vmem:[#allocation0] sm:$0x1] %vm57, %v56
    %s59 = scalar_lea.vmem %s0, 4
    %v60 = vld [vmem:[%s59] sm:$0x1]
    %61 = vrot.lane.b32.xlu0 %v60, 32
    %v62 = vpop.permute.xlu0 %61
    %vm63 = vcmask 326912
    %64 = vst.msk [vmem:[#allocation0] sm:$0x1] %vm63, %v62
    %s65 = scalar_lea.vmem %s0, 3
    %v66 = vld [vmem:[%s65] sm:$0x1]
    %67 = vrot.lane.b32.xlu0 %v66, 24
    %v68 = vpop.permute.xlu0 %67
    %vm69 = vcmask 261312
    %70 = vst.msk [vmem:[#allocation0] sm:$0x1] %vm69, %v68
    %s71 = scalar_lea.vmem %s0, 2
    %v72 = vld [vmem:[%s71] sm:$0x1]
    %73 = vrot.lane.b32.xlu0 %v72, 16
    %v74 = vpop.permute.xlu0 %73
    %vm75 = vcmask 195712
    %76 = vst.msk [vmem:[#allocation0] sm:$0x1] %vm75, %v74
    %s77 = scalar_lea.vmem %s0, 1
    %v78 = vld [vmem:[%s77] sm:$0x1]
    %79 = vrot.lane.b32.xlu0 %v78, 8
    %v80 = vpop.permute.xlu0 %79
    %vm81 = vcmask 130112
    %82 = vst.msk [vmem:[#allocation0] sm:$0x1] %vm81, %v80
    %s84 = ssub.s32 2, 1
    %v85 = vld [vmem:[#allocation0] sm:%s84]
    %s87 = ssub.s32 2, 1
    %88 = vst [vmem:[%s1] sm:%s87] %v85

// kernel: conv_block.1
$region0: #{conv_block.1}
  #allocation0 [shape = 'u32[]', space=smem, size = 0x4, offset = 0x4, fixed_abs, tag = 'smem constant byte address 0x4 - core index']
  #allocation1 [shape = 'u32[72,128]{1,0:T(1,128)}', space=vmem, size = 0x9000, scoped, tag = 'internal scratch']
  %s0 = inlined_call_operand.vmem [shape: f32[32,64], index: 0, kind: input, shape index: {}]
  %s1 = inlined_call_operand.vmem [shape: f32[64,384], index: 1, kind: input, shape index: {}]
  %s2 = inlined_call_operand.vmem [shape: f32[1,128], index: 2, kind: input, shape index: {}]
  %s3 = inlined_call_operand.vmem [shape: f32[32,128], index: 3, kind: output, shape index: {}]
  %s4 = sld [smem:[#allocation0]]
  $region22: #{conv_block.1} parent=0
    _
  %s6 = ssub.s32 1, %s4
  %s7 = scalar_select 0, %s6, %s4
  // Predicated region
  $region2: #{conv_block.1} parent=0 // pred_check
    _
  $region3: #{conv_block.1} parent=0 // pred_check_branch
    %9 = sbr.rel (0) target = $region5
  $region4: #{conv_block.1} parent=0 // pred_region
    _
  $region5: #{conv_block.1} parent=0 // pred_fallthru
    _
  // Predicated region
  $region6: #{conv_block.1} parent=0 // pred_check
    _
  $region7: #{conv_block.1} parent=0 // pred_check_branch
    %11 = sbr.rel (0) target = $region9
  $region8: #{conv_block.1} parent=0 // pred_region
    _
  $region9: #{conv_block.1} parent=0 // pred_fallthru
    _
  // Predicated region
  $region10: #{conv_block.1} parent=0 // pred_check
    _
  $region11: #{conv_block.1} parent=0 // pred_check_branch
    %13 = sbr.rel (0) target = $region13
  $region12: #{conv_block.1} parent=0 // pred_region
    _
  $region13: #{conv_block.1} parent=0 // pred_fallthru
    _
  %v14 = vld [vmem:[%s0] sm:$0xff]
  %v15 = vld [vmem:[%s0 + $0x8] sm:$0xff]
  %v16 = vld [vmem:[%s0 + $0x10] sm:$0xff]
  %v17 = vld [vmem:[%s0 + $0x18] sm:$0xff]
  %v18 = vld [vmem:[%s1] sm:$0xff]
  %v19 = vld [vmem:[%s1 + $0x8] sm:$0xff]
  %v20 = vld [vmem:[%s1 + $0x10] sm:$0xff]
  %v21 = vld [vmem:[%s1 + $0x18] sm:$0xff]
  %v22 = vld [vmem:[%s1 + $0x20] sm:$0xff]
  %v23 = vld [vmem:[%s1 + $0x28] sm:$0xff]
  %v24 = vld [vmem:[%s1 + $0x30] sm:$0xff]
  %v25 = vld [vmem:[%s1 + $0x38] sm:$0xff]
  %v26 = vld [vmem:[%s1 + $0x40] sm:$0xff]
  %v27 = vld [vmem:[%s1 + $0x48] sm:$0xff]
  %v28 = vld [vmem:[%s1 + $0x50] sm:$0xff]
  %v29 = vld [vmem:[%s1 + $0x58] sm:$0xff]
  %v30 = vld [vmem:[%s1 + $0x60] sm:$0xff]
  %v31 = vld [vmem:[%s1 + $0x68] sm:$0xff]
  %v32 = vld [vmem:[%s1 + $0x70] sm:$0xff]
  %v33 = vld [vmem:[%s1 + $0x78] sm:$0xff]
  %v34 = vld [vmem:[%s1 + $0x80] sm:$0xff]
  %v35 = vld [vmem:[%s1 + $0x88] sm:$0xff]
  %v36 = vld [vmem:[%s1 + $0x90] sm:$0xff]
  %v37 = vld [vmem:[%s1 + $0x98] sm:$0xff]
  %v38 = vld [vmem:[%s1 + $0xa0] sm:$0xff]
  %v39 = vld [vmem:[%s1 + $0xa8] sm:$0xff]
  %v40 = vld [vmem:[%s1 + $0xb0] sm:$0xff]
  %v41 = vld [vmem:[%s1 + $0xb8] sm:$0xff]
  %vm42 = vcmask 523264
  %v44 = vsel %vm42, %v14, 0
  %v47 = vsel %vm42, %v15, 0
  %v50 = vsel %vm42, %v16, 0
  %v53 = vsel %vm42, %v17, 0
  %55 = vmatpush.msra.mxu0 0.0
  %56 = vmatpush.msra.mxu0 0.0
  %57 = vmatpush.msra.mxu0 0.0
  %58 = vmatpush.msra.mxu0 0.0
  %59 = vmatpush.msra.mxu0 0.0
  %60 = vmatpush.msra.mxu0 0.0
  %61 = vmatpush.msra.mxu0 0.0
  %62 = vmatpush.msra.mxu0 0.0
  %63 = vmatpush.msra.mxu0 %v39
  %64 = vmatpush.msra.mxu0 %v36
  %65 = vmatpush.msra.mxu0 %v33
  %66 = vmatpush.msra.mxu0 %v30
  %67 = vmatpush.msra.mxu0 %v27
  %68 = vmatpush.msra.mxu0 %v24
  %69 = vmatpush.msra.mxu0 %v21
  %70 = vmatpush.msra.mxu0 %v18
  %71 = vmatmul.f32.gmra.mxu0 %v44
  %v72 = vpop.f32.mrf.mxu0
  %v73 = vadd.f32 0.0, %v72
  %74 = vmatmul.f32.gmra.mxu0 %v47
  %v75 = vpop.f32.mrf.mxu0
  %v76 = vadd.f32 0.0, %v75
  %77 = vmatmul.f32.gmra.mxu0 %v50
  %v78 = vpop.f32.mrf.mxu0
  %v79 = vadd.f32 0.0, %v78
  %80 = vmatmul.f32.gmra.mxu0 %v53
  %v81 = vpop.f32.mrf.mxu0
  %v82 = vadd.f32 0.0, %v81
  %83 = vdwg.mxu0
  %84 = vmatpush.msra.mxu0 0.0
  %85 = vmatpush.msra.mxu0 0.0
  %86 = vmatpush.msra.mxu0 0.0
  %87 = vmatpush.msra.mxu0 0.0
  %88 = vmatpush.msra.mxu0 0.0
  %89 = vmatpush.msra.mxu0 0.0
  %90 = vmatpush.msra.mxu0 0.0
  %91 = vmatpush.msra.mxu0 0.0
  %92 = vmatpush.msra.mxu0 %v40
  %93 = vmatpush.msra.mxu0 %v37
  %94 = vmatpush.msra.mxu0 %v34
  %95 = vmatpush.msra.mxu0 %v31
  %96 = vmatpush.msra.mxu0 %v28
  %97 = vmatpush.msra.mxu0 %v25
  %98 = vmatpush.msra.mxu0 %v22
  %99 = vmatpush.msra.mxu0 %v19
  %100 = vmatmul.f32.gmra.mxu0 %v44
  %v101 = vpop.f32.mrf.mxu0
  %v102 = vadd.f32 0.0, %v101
  %103 = vmatmul.f32.gmra.mxu0 %v47
  %v104 = vpop.f32.mrf.mxu0
  %v105 = vadd.f32 0.0, %v104
  %106 = vmatmul.f32.gmra.mxu0 %v50
  %v107 = vpop.f32.mrf.mxu0
  %v108 = vadd.f32 0.0, %v107
  %109 = vmatmul.f32.gmra.mxu0 %v53
  %v110 = vpop.f32.mrf.mxu0
  %v111 = vadd.f32 0.0, %v110
  %112 = vdwg.mxu0
  %113 = vmatpush.msra.mxu0 0.0
  %114 = vmatpush.msra.mxu0 0.0
  %115 = vmatpush.msra.mxu0 0.0
  %116 = vmatpush.msra.mxu0 0.0
  %117 = vmatpush.msra.mxu0 0.0
  %118 = vmatpush.msra.mxu0 0.0
  %119 = vmatpush.msra.mxu0 0.0
  %120 = vmatpush.msra.mxu0 0.0
  %121 = vmatpush.msra.mxu0 %v41
  %122 = vmatpush.msra.mxu0 %v38
  %123 = vmatpush.msra.mxu0 %v35
  %124 = vmatpush.msra.mxu0 %v32
  %125 = vmatpush.msra.mxu0 %v29
  %126 = vmatpush.msra.mxu0 %v26
  %127 = vmatpush.msra.mxu0 %v23
  %128 = vmatpush.msra.mxu0 %v20
  %129 = vmatmul.f32.gmra.mxu0 %v44
  %v130 = vpop.f32.mrf.mxu0
  %v131 = vadd.f32 0.0, %v130
  %132 = vmatmul.f32.gmra.mxu0 %v47
  %v133 = vpop.f32.mrf.mxu0
  %v134 = vadd.f32 0.0, %v133
  %135 = vmatmul.f32.gmra.mxu0 %v50
  %v136 = vpop.f32.mrf.mxu0
  %v137 = vadd.f32 0.0, %v136
  %138 = vmatmul.f32.gmra.mxu0 %v53
  %v139 = vpop.f32.mrf.mxu0
  %v140 = vadd.f32 0.0, %v139
  %141 = vdwg.mxu0
  %v142 = vld [vmem:[%s2] sm:$0x1]
  %v144 = vperm.slane %v142, 0
  %v146 = vadd.f32 %v144, %v73
  %v147 = vadd.f32 %v144, %v76
  %v148 = vadd.f32 %v144, %v79
  %v149 = vadd.f32 %v144, %v82
  %v150 = vrot.slane %v102, 1
  %v151 = vrot.slane %v105, 1
  %v152 = vrot.slane %v108, 1
  %v153 = vrot.slane %v111, 1
  %v154 = vlaneseq
  %v155 = vshrl.u32 %v154, 7
  %vm156 = vcmp.lt.s32.totalorder %v155, 7
  %v157 = vsel %vm156, %v152, %v153
  %v158 = vsel %vm156, %v151, %v152
  %v159 = vsel %vm156, %v150, %v151
  %v160 = vsel %vm156, %v153, %v150
  %v161 = vadd.f32 %v146, %v159
  %v162 = vadd.f32 %v147, %v158
  %v163 = vadd.f32 %v148, %v157
  %v164 = vadd.f32 %v149, %v160
  %v165 = vrot.slane %v131, 2
  %v166 = vrot.slane %v134, 2
  %v167 = vrot.slane %v137, 2
  %v168 = vrot.slane %v140, 2
  %vm169 = vcmp.lt.s32.totalorder %v155, 6
  %v170 = vsel %vm169, %v167, %v168
  %v171 = vsel %vm169, %v166, %v167
  %v172 = vsel %vm169, %v165, %v166
  %v173 = vsel %vm169, %v168, %v165
  %v174 = vadd.f32 %v161, %v172
  %v175 = vadd.f32 %v162, %v171
  %v176 = vadd.f32 %v163, %v170
  %v177 = vadd.f32 %v164, %v173
  %v178 = vmax.f32 %v174, 0.0
  %v179 = vmax.f32 %v175, 0.0
  %v180 = vmax.f32 %v176, 0.0
  %v181 = vmax.f32 %v177, 0.0
  %182 = vst [vmem:[%s3] sm:$0xff] %v178
  %183 = vst [vmem:[%s3 + $0x8] sm:$0xff] %v179
  %184 = vst [vmem:[%s3 + $0x10] sm:$0xff] %v180
  %185 = vst [vmem:[%s3 + $0x18] sm:$0xff] %v181
  // Predicated region
  $region14: #{conv_block.1} parent=0 // pred_check
    _
  $region15: #{conv_block.1} parent=0 // pred_check_branch
    %187 = sbr.rel (0) target = $region17
  $region16: #{conv_block.1} parent=0 // pred_region
    _
  $region17: #{conv_block.1} parent=0 // pred_fallthru
    _
  // Predicated region
  $region18: #{conv_block.1} parent=0 // pred_check
    _
  $region19: #{conv_block.1} parent=0 // pred_check_branch
    %189 = sbr.rel (0) target = $region21
  $region20: #{conv_block.1} parent=0 // pred_region
    _
  $region21: #{conv_block.1} parent=0 // pred_fallthru
    _

</llo_original>
